<compile_context>
chip_gen: v6e
topology: v6e:2x2x1
jax: 0.10.0
libtpu: 0.0.40
codegen_flags: <defaults>
</compile_context>

<pallas_src>
import functools

import jax
import jax.numpy as jnp
from jax import lax
from jax.experimental import pallas as pl
from jax.experimental.pallas import tpu as pltpu

_FAST_PATH_BYTES = 1 << 20          # single-block plain-softmax path below this
_BLOCK_BUDGET = 4 * 1024 * 1024     # bytes per streamed hidden_states buffer
_VMEM_LIMIT = 32 * 1024 * 1024      # safe scoped-VMEM limit on v5e/v6e/v7x


def _round_up(x, m):
    return ((x + m - 1) // m) * m


# ----------------------------------------------------------------------------
# Kernel 1: single-block fast path (small N*H): plain softmax, no scratch.
# ----------------------------------------------------------------------------
def _single_block_kernel(qp_ref, h_ref, o_ref):
    h = h_ref[...].astype(jnp.float32)                       # (N, H)
    qp = qp_ref[...]                                         # (1, H)
    s = jnp.sum(h * qp, axis=-1, keepdims=True)              # (N, 1)
    s = s - jnp.max(s, axis=0, keepdims=True)
    p = jnp.exp(s)                                           # (N, 1)
    denom = jnp.sum(p, axis=0, keepdims=True)                # (1, 1)
    o_ref[...] = (jnp.sum(h * p, axis=0, keepdims=True) / denom).astype(o_ref.dtype)


# ----------------------------------------------------------------------------
# Kernel 2: lane-packed streaming online softmax (H divides 128).
#   hidden_states is viewed as (n_rows, 128) with pack = 128 // H original
#   rows per packed row.  Scores and probability-expansion use the MXU.
# ----------------------------------------------------------------------------
def _stream_packed_kernel(pack, tile_rows, n_ref, qpmat_ref, h_ref, e_ref,
                          o_ref, m_sc, l_sc, acc_sc):
    step = pl.program_id(0)
    n_valid = n_ref[0]

    @pl.when(step == 0)
    def _():
        m_sc[...] = jnp.full(m_sc.shape, -jnp.inf, dtype=jnp.float32)
        l_sc[...] = jnp.zeros(l_sc.shape, dtype=jnp.float32)
        acc_sc[...] = jnp.zeros(acc_sc.shape, dtype=jnp.float32)

    h = h_ref[...].astype(jnp.float32)                        # (tile_rows, 128)

    # scores for the `pack` original rows inside each packed row: one MXU matmul
    # against the block-diagonal projected-query matrix (128, pack).
    s = jnp.dot(h, qpmat_ref[...], preferred_element_type=jnp.float32)  # (tile_rows, pack)

    # mask padded original rows (cheap: only the tiny score array is touched).
    r_idx = lax.broadcasted_iota(jnp.int32, s.shape, 0)
    c_idx = lax.broadcasted_iota(jnp.int32, s.shape, 1)
    orig_row = (step * tile_rows + r_idx) * pack + c_idx
    s = jnp.where(orig_row < n_valid, s, -jnp.inf)

    m_prev = m_sc[...]
    m_tile = jnp.max(jnp.max(s, axis=0, keepdims=True), axis=1, keepdims=True)
    m_new = jnp.maximum(m_prev, m_tile)                       # (1, 1)
    alpha = jnp.exp(m_prev - m_new)                           # (1, 1)
    p = jnp.exp(s - m_new)                                    # (tile_rows, pack); 0 on pads

    l_sc[...] = alpha * l_sc[...] + jnp.sum(
        jnp.sum(p, axis=0, keepdims=True), axis=1, keepdims=True)

    # expand probabilities back to the packed lane layout (segment-constant)
    # with a tiny MXU matmul against the 0/1 expansion matrix (pack, 128).
    p_expand = jnp.dot(p, e_ref[...], preferred_element_type=jnp.float32)  # (tile_rows, 128)
    acc_sc[...] = alpha * acc_sc[...] + jnp.sum(h * p_expand, axis=0, keepdims=True)
    m_sc[...] = m_new

    @pl.when(step == pl.num_programs(0) - 1)
    def _():
        o_ref[...] = (acc_sc[...] / l_sc[...]).astype(o_ref.dtype)  # exact divide


# ----------------------------------------------------------------------------
# Kernel 3: generic streaming online softmax (H >= 128 or H does not pack).
#   VPU lane/sublane reductions; no transposes, no degenerate MXU matmuls.
# ----------------------------------------------------------------------------
def _stream_kernel(tile_rows, n_ref, qp_ref, h_ref, o_ref, m_sc, l_sc, acc_sc):
    step = pl.program_id(0)
    n_valid = n_ref[0]

    @pl.when(step == 0)
    def _():
        m_sc[...] = jnp.full(m_sc.shape, -jnp.inf, dtype=jnp.float32)
        l_sc[...] = jnp.zeros(l_sc.shape, dtype=jnp.float32)
        acc_sc[...] = jnp.zeros(acc_sc.shape, dtype=jnp.float32)

    h = h_ref[...].astype(jnp.float32)                        # (tile_rows, H)
    qp = qp_ref[...]                                          # (1, H)
    s = jnp.sum(h * qp, axis=-1, keepdims=True)               # (tile_rows, 1)

    row = step * tile_rows + lax.broadcasted_iota(jnp.int32, s.shape, 0)
    s = jnp.where(row < n_valid, s, -jnp.inf)

    m_prev = m_sc[...]
    m_new = jnp.maximum(m_prev, jnp.max(s, axis=0, keepdims=True))  # (1, 1)
    alpha = jnp.exp(m_prev - m_new)
    p = jnp.exp(s - m_new)                                    # (tile_rows, 1)

    l_sc[...] = alpha * l_sc[...] + jnp.sum(p, axis=0, keepdims=True)
    acc_sc[...] = alpha * acc_sc[...] + jnp.sum(h * p, axis=0, keepdims=True)
    m_sc[...] = m_new

    @pl.when(step == pl.num_programs(0) - 1)
    def _():
        o_ref[...] = (acc_sc[...] / l_sc[...]).astype(o_ref.dtype)  # exact divide


# ----------------------------------------------------------------------------
# Wrappers
# ----------------------------------------------------------------------------
def _fast_path(q_proj, hidden_states):
    N, H = hidden_states.shape
    out = pl.pallas_call(
        _single_block_kernel,
        out_shape=jax.ShapeDtypeStruct((1, H), jnp.float32),
        grid_spec=pltpu.PrefetchScalarGridSpec(
            num_scalar_prefetch=0,
            grid=(1,),
            in_specs=[pl.BlockSpec((1, H), lambda i: (0, 0)),
                      pl.BlockSpec((N, H), lambda i: (0, 0))],
            out_specs=pl.BlockSpec((1, H), lambda i: (0, 0)),
        ),
    )(q_proj.reshape(1, H), hidden_states)
    return out[0]


def _stream_packed(q_proj, hidden_states):
    N, H = hidden_states.shape
    dt = hidden_states.dtype
    itemsize = jnp.dtype(dt).itemsize
    pack = 128 // H
    W = pack * H                                   # == 128

    rows_budget = max(32, (_BLOCK_BUDGET // (W * itemsize)) // 32 * 32)
    n_rows_needed = pl.cdiv(N, pack)
    tile_rows = min(rows_budget, _round_up(n_rows_needed, 32))
    num_tiles = pl.cdiv(n_rows_needed, tile_rows)
    n_pad = num_tiles * tile_rows * pack
    if n_pad != N:
        # zero-fill pad (one copy); a serving system should hand us a pre-padded
        # buffer so this disappears.  Zeros -> no NaN hazard; scores are masked.
        hidden_states = jnp.pad(hidden_states, ((0, n_pad - N), (0, 0)))
    hp = hidden_states.reshape(num_tiles * tile_rows, W)   # free: row-major merge

    # Block-diagonal projected query (W, pack): QP[j*H+k, j] = q_proj[k].
    qpmat = jnp.kron(jnp.eye(pack, dtype=jnp.float32), q_proj.reshape(H, 1))
    # Expansion matrix (pack, W): E[j, j*H+k] = 1.
    emat = jnp.kron(jnp.eye(pack, dtype=jnp.float32), jnp.ones((1, H), jnp.float32))
    n_valid = jnp.array([N], dtype=jnp.int32)

    kernel = functools.partial(_stream_packed_kernel, pack, tile_rows)
    out = pl.pallas_call(
        kernel,
        out_shape=jax.ShapeDtypeStruct((1, W), jnp.float32),
        grid_spec=pltpu.PrefetchScalarGridSpec(
            num_scalar_prefetch=1,
            grid=(num_tiles,),
            in_specs=[
                pl.BlockSpec((W, pack), lambda i, n: (0, 0)),        # qpmat
                pl.BlockSpec((tile_rows, W), lambda i, n: (i, 0)),   # packed h tile
                pl.BlockSpec((pack, W), lambda i, n: (0, 0)),        # expansion mat
            ],
            out_specs=pl.BlockSpec((1, W), lambda i, n: (0, 0)),
            scratch_shapes=[
                pltpu.VMEM((1, 1), jnp.float32),   # running max
                pltpu.VMEM((1, 1), jnp.float32),   # running denominator
                pltpu.VMEM((1, W), jnp.float32),   # running packed weighted sum
            ],
        ),
        compiler_params=pltpu.CompilerParams(
            dimension_semantics=("arbitrary",),     # N is a reduction axis
            vmem_limit_bytes=_VMEM_LIMIT,
        ),
    )(n_valid, qpmat, hp, emat)
    # combine the `pack` lane segments (each holds a partial sum over rows).
    return out.reshape(pack, H).sum(axis=0)


def _stream_generic(q_proj, hidden_states):
    N, H = hidden_states.shape
    itemsize = jnp.dtype(hidden_states.dtype).itemsize

    rows_budget = max(32, (_BLOCK_BUDGET // (H * itemsize)) // 32 * 32)
    tile_rows = min(rows_budget, _round_up(N, 32))
    num_tiles = pl.cdiv(N, tile_rows)
    n_pad = num_tiles * tile_rows
    if n_pad != N:
        hidden_states = jnp.pad(hidden_states, ((0, n_pad - N), (0, 0)))
    n_valid = jnp.array([N], dtype=jnp.int32)

    kernel = functools.partial(_stream_kernel, tile_rows)
    out = pl.pallas_call(
        kernel,
        out_shape=jax.ShapeDtypeStruct((1, H), jnp.float32),
        grid_spec=pltpu.PrefetchScalarGridSpec(
            num_scalar_prefetch=1,
            grid=(num_tiles,),
            in_specs=[
                pl.BlockSpec((1, H), lambda i, n: (0, 0)),           # projected query
                pl.BlockSpec((tile_rows, H), lambda i, n: (i, 0)),   # h tile
            ],
            out_specs=pl.BlockSpec((1, H), lambda i, n: (0, 0)),
            scratch_shapes=[
                pltpu.VMEM((1, 1), jnp.float32),   # running max
                pltpu.VMEM((1, 1), jnp.float32),   # running denominator
                pltpu.VMEM((1, H), jnp.float32),   # running weighted sum
            ],
        ),
        compiler_params=pltpu.CompilerParams(
            dimension_semantics=("arbitrary",),
            vmem_limit_bytes=_VMEM_LIMIT,
        ),
    )(n_valid, q_proj.reshape(1, H), hidden_states)
    return out[0]


def query_attention(query, hidden_states, w_in, b_in):
    """query: (H,), hidden_states: (N, H), w_in: (H, H) [out, in], b_in: (H,)."""
    H = query.shape[0]
    N = hidden_states.shape[0]
    if N == 0:
        # matches the PyTorch early-return torch.zeros(hidden_dim)
        return jnp.zeros((H,), dtype=jnp.float32)

    # linear_in hoisted out of the kernel (one-shot GEMV, keeps the (H,H) weight
    # out of VMEM entirely).
    q_proj = (query.astype(jnp.float32) @ w_in.astype(jnp.float32).T
              + b_in.astype(jnp.float32))

    total_bytes = N * H * jnp.dtype(hidden_states.dtype).itemsize
    if total_bytes <= _FAST_PATH_BYTES:
        return _fast_path(q_proj, hidden_states)
    if H < 128 and 128 % H == 0:
        return _stream_packed(q_proj, hidden_states)
    return _stream_generic(q_proj, hidden_states)


# ----------------------------------------------------------------------------
# Reference + driver
# ----------------------------------------------------------------------------
def _reference(query, hidden_states, w_in, b_in):
    q_proj = (query.astype(jnp.float32) @ w_in.astype(jnp.float32).T
              + b_in.astype(jnp.float32))
    scores = hidden_states.astype(jnp.float32) @ q_proj
    att = jax.nn.softmax(scores, axis=0)[:, None]
    return jnp.sum(hidden_states.astype(jnp.float32) * att, axis=0)


def _pytorch_linear_init(key, out_features, in_features):
    """Deterministic init matching nn.Linear default: U(-1/sqrt(in), 1/sqrt(in))."""
    kw, kb = jax.random.split(key)
    bound = 1.0 / jnp.sqrt(jnp.float32(in_features))
    w = jax.random.uniform(kw, (out_features, in_features), jnp.float32, -bound, bound)
    b = jax.random.uniform(kb, (out_features,), jnp.float32, -bound, bound)
    return w, b


if __name__ == "__main__":
    hidden_dim = 32   # H
    seq_len = 8       # N = number of hidden states

    key = jax.random.PRNGKey(0)
    k_q, k_h, k_lin, k_big, k_q2, k_h2, k_lin2 = jax.random.split(key, 7)

    # --- primary (module-sized) test: N=8, H=32  -> single-block fast path ----
    query = jax.random.normal(k_q, (hidden_dim,), jnp.float32)
    hidden_states = jax.random.normal(k_h, (seq_len, hidden_dim), jnp.float32)
    w_in, b_in = _pytorch_linear_init(k_lin, hidden_dim, hidden_dim)
    # self.attSeq / self.tanh exist in the module but are unused in forward().

    out = jax.block_until_ready(query_attention(query, hidden_states, w_in, b_in))
    ref = _reference(query, hidden_states, w_in, b_in)
    assert out.shape == (hidden_dim,)
    assert jnp.allclose(out, ref, atol=1e-4, rtol=1e-4), (out, ref)

    # --- secondary test: large N, small H  -> lane-packed streaming path ------
    big_h = jax.random.normal(k_big, (50_000, hidden_dim), jnp.float32)
    out_big = jax.block_until_ready(query_attention(query, big_h, w_in, b_in))
    ref_big = _reference(query, big_h, w_in, b_in)
    assert jnp.allclose(out_big, ref_big, atol=1e-3, rtol=1e-3), (out_big, ref_big)

    # --- secondary test: large N, H=256  -> generic streaming path ------------
    H2 = 256
    query2 = jax.random.normal(k_q2, (H2,), jnp.float32)
    hidden2 = jax.random.normal(k_h2, (9_000, H2), jnp.float32)
    w2, b2 = _pytorch_linear_init(k_lin2, H2, H2)
    out2 = jax.block_until_ready(query_attention(query2, hidden2, w2, b2))
    ref2 = _reference(query2, hidden2, w2, b2)
    assert jnp.allclose(out2, ref2, atol=1e-3, rtol=1e-3), (out2, ref2)

    print("KERNEL_OK")
</pallas_src>

<mosaic_0001>
module attributes {stable_mosaic.version = 11 : i64} {
  func.func @_single_block_kernel(%arg0: i32, %arg1: memref<1x32xf32, #tpu.memory_space<vmem>>, %arg2: memref<8x32xf32, #tpu.memory_space<vmem>>, %arg3: memref<1x32xf32, #tpu.memory_space<vmem>>) attributes {dimension_semantics = [#tpu.dimension_semantics<arbitrary>], iteration_bounds = array<i64: 1>, scalar_prefetch = 0 : i64, scratch_operands = 0 : i64, tpu.core_type = #tpu.core_type<tc>, window_params = [{pipeline_mode = #tpu.pipeline_mode<synchronous>, transform_indices = @transform_0, window_bounds = array<i64: 1, 32>}, {pipeline_mode = #tpu.pipeline_mode<synchronous>, transform_indices = @transform_1, window_bounds = array<i64: 8, 32>}, {pipeline_mode = #tpu.pipeline_mode<synchronous>, transform_indices = @transform_2, window_bounds = array<i64: 1, 32>}]} {
    %c0 = arith.constant 0 : index
    %c0_0 = arith.constant 0 : index
    %0 = vector.load %arg2[%c0, %c0_0] : memref<8x32xf32, #tpu.memory_space<vmem>>, vector<8x32xf32>
    %c0_1 = arith.constant 0 : index
    %c0_2 = arith.constant 0 : index
    %1 = vector.load %arg1[%c0_1, %c0_2] : memref<1x32xf32, #tpu.memory_space<vmem>>, vector<1x32xf32>
    %2 = vector.broadcast %1 : vector<1x32xf32> to vector<8x32xf32>
    %3 = arith.mulf %0, %2 : vector<8x32xf32>
    %cst = arith.constant dense<0.000000e+00> : vector<8xf32>
    %4 = vector.multi_reduction <add>, %3, %cst [1] : vector<8x32xf32> to vector<8xf32>
    %5 = vector.shape_cast %4 : vector<8xf32> to vector<8x1xf32>
    %cst_3 = arith.constant dense<0xFF800000> : vector<1xf32>
    %6 = vector.multi_reduction <maximumf>, %5, %cst_3 [0] : vector<8x1xf32> to vector<1xf32>
    %7 = vector.shape_cast %6 : vector<1xf32> to vector<1x1xf32>
    %8 = vector.broadcast %7 : vector<1x1xf32> to vector<8x1xf32>
    %9 = arith.subf %5, %8 : vector<8x1xf32>
    %10 = math.exp %9 : vector<8x1xf32>
    %cst_4 = arith.constant dense<0.000000e+00> : vector<1xf32>
    %11 = vector.multi_reduction <add>, %10, %cst_4 [0] : vector<8x1xf32> to vector<1xf32>
    %12 = vector.shape_cast %11 : vector<1xf32> to vector<1x1xf32>
    %13 = vector.broadcast %10 : vector<8x1xf32> to vector<8x32xf32>
    %14 = arith.mulf %0, %13 : vector<8x32xf32>
    %cst_5 = arith.constant dense<0.000000e+00> : vector<32xf32>
    %15 = vector.multi_reduction <add>, %14, %cst_5 [0] : vector<8x32xf32> to vector<32xf32>
    %16 = vector.shape_cast %15 : vector<32xf32> to vector<1x32xf32>
    %17 = vector.broadcast %12 : vector<1x1xf32> to vector<1x32xf32>
    %18 = arith.divf %16, %17 : vector<1x32xf32>
    %c0_6 = arith.constant 0 : index
    %c0_7 = arith.constant 0 : index
    %19 = vector.load %arg3[%c0_6, %c0_7] : memref<1x32xf32, #tpu.memory_space<vmem>>, vector<1x32xf32>
    tpu.vector_store %arg3[%c0_6, %c0_7], %18 {strides = array<i32>} : memref<1x32xf32, #tpu.memory_space<vmem>>, vector<1x32xf32>,
    return
  }
  func.func @transform_0(%arg0: i32) -> (i32, i32) {
    %c0_i32 = arith.constant 0 : i32
    %c0_i32_0 = arith.constant 0 : i32
    %c0_i32_1 = arith.constant 0 : i32
    return %c0_i32, %c0_i32_0 : i32, i32
  }
  func.func @transform_1(%arg0: i32) -> (i32, i32) {
    %c0_i32 = arith.constant 0 : i32
    %c0_i32_0 = arith.constant 0 : i32
    %c0_i32_1 = arith.constant 0 : i32
    return %c0_i32, %c0_i32_0 : i32, i32
  }
  func.func @transform_2(%arg0: i32) -> (i32, i32) {
    %c0_i32 = arith.constant 0 : i32
    %c0_i32_0 = arith.constant 0 : i32
    %c0_i32_1 = arith.constant 0 : i32
    return %c0_i32, %c0_i32_0 : i32, i32
  }
}

</mosaic_0001>

<llo_original>
// kernel: tpu_custom_call.1
$region0: #{tpu_custom_call.1}
  #allocation0 [shape = 'u32[]', space=smem, size = 0x4, offset = 0x4, fixed_abs, tag = 'smem constant byte address 0x4 - core index']
  #allocation1 [shape = 'u32[144,128]{1,0:T(1,128)}', space=vmem, size = 0x12000, scoped, tag = 'internal scratch']
  %s0 = inlined_call_operand.hbm [shape: f32[1,32], index: 0, kind: input, shape index: {}]
  %s1 = inlined_call_operand.hbm [shape: f32[8,32], index: 1, kind: input, shape index: {}]
  %s2 = inlined_call_operand.hbm [shape: f32[1,32], index: 2, kind: output, shape index: {}]
  %s3 = sld [smem:[#allocation0]]
  $region26: #{tpu_custom_call.1} parent=0
    _
  %s5 = ssub.s32 1, %s3
  %s6 = scalar_select 0, %s5, %s3
  $region1: #{tpu_custom_call.1} parent=0
    #allocation2 [shape = 'u8[512]{0}', space=vmem, size = 0x400, scoped, tag = 'input window, operand 0, single buffered']
    #allocation3 [shape = 's32[1]{0}', space=sflag, size = 0x4, scoped, tag = 'scoped memory for tpu_custom_call.1']
    #allocation4 [shape = 's32[1]{0}', space=sflag, size = 0x4, scoped, tag = 'scoped memory for tpu_custom_call.1']
    #allocation5 [shape = 'u8[4096]{0}', space=vmem, size = 0x1000, scoped, tag = 'input window, operand 1, single buffered']
    #allocation6 [shape = 's32[1]{0}', space=sflag, size = 0x4, scoped, tag = 'scoped memory for tpu_custom_call.1']
    #allocation7 [shape = 'u8[512]{0}', space=vmem, size = 0x400, scoped, tag = 'output window, operand 0, single buffered']
    %7 = vsyncpa [#allocation3], 0
    %8 = vsyncpa [#allocation6], 0
    %9 = vsyncpa [#allocation4], 0
    // Predicated region
    $region2: #{tpu_custom_call.1} parent=1 // pred_check
      _
    $region3: #{tpu_custom_call.1} parent=1 // pred_check_branch
      %11 = sbr.rel (0) target = $region5
    $region4: #{tpu_custom_call.1} parent=1 // pred_region
      %s13 = ssub.s32 16, 16
      %14 = vsyncadd [#allocation3], %s13
      %s16 = sshll.u32 [#allocation2], 4
      %s17 = int_to_ptr.vmem [resolvable:$true] %s16
      %19 = dma.hbm_to_vmem [thread:$0]  %s0, 16, %s17, [#allocation3]
    $region5: #{tpu_custom_call.1} parent=1 // pred_fallthru
      _
    // Predicated region
    $region6: #{tpu_custom_call.1} parent=1 // pred_check
      _
    $region7: #{tpu_custom_call.1} parent=1 // pred_check_branch
      %21 = sbr.rel (0) target = $region9
    $region8: #{tpu_custom_call.1} parent=1 // pred_region
      %s23 = ssub.s32 128, 128
      %24 = vsyncadd [#allocation6], %s23
      %s26 = sshll.u32 [#allocation5], 4
      %s27 = int_to_ptr.vmem [resolvable:$true] %s26
      %29 = dma.hbm_to_vmem [thread:$0]  %s1, 128, %s27, [#allocation6]
    $region9: #{tpu_custom_call.1} parent=1 // pred_fallthru
      _
    // Predicated region
    $region10: #{tpu_custom_call.1} parent=1 // pred_check
      _
    $region11: #{tpu_custom_call.1} parent=1 // pred_check_branch
      %31 = sbr.rel (0) target = $region13
    $region12: #{tpu_custom_call.1} parent=1 // pred_region
      %32 = dma.done [#allocation3], 16
    $region13: #{tpu_custom_call.1} parent=1 // pred_fallthru
      _
    // Predicated region
    $region14: #{tpu_custom_call.1} parent=1 // pred_check
      _
    $region15: #{tpu_custom_call.1} parent=1 // pred_check_branch
      %34 = sbr.rel (0) target = $region17
    $region16: #{tpu_custom_call.1} parent=1 // pred_region
      %35 = dma.done [#allocation6], 128
    $region17: #{tpu_custom_call.1} parent=1 // pred_fallthru
      _
    %v36 = vld [vmem:[#allocation5] sm:$0xff]
    %v37 = vld [vmem:[#allocation2] sm:$0x1]
    %v39 = vlaneseq
    %v40 = vshrl.u32 %v39, 7
    %v41 = vsub.s32 0, %v40
    %v42 = vrot.slane %v37, %v41
    %v44 = vmul.f32 %v36, %v42
    %vm45 = vcmask 261120
    %v46 = vsel %vm45, %v44, 0.0
    %47 = vadd.xlane.f32.xlu0 %v46
    %v48 = vpop.xlane.xlu0 %47
    %v49 = vrot.slane %v48, 4
    %v50 = vmax.f32 %v48, %v49
    %v51 = vrot.slane %v50, 2
    %v52 = vmax.f32 %v50, %v51
    %v53 = vrot.slane %v52, 1
    %v54 = vmax.f32 %v52, %v53
    %v55 = vsub.f32 %v48, %v54
    %v56 = vmul.f32 %v55, 1.442695
    %v57 = vpow.pop %v56
    %v58 = vrot.slane %v57, 4
    %v59 = vadd.f32 %v57, %v58
    %v60 = vrot.slane %v59, 2
    %v61 = vadd.f32 %v59, %v60
    %v62 = vrot.slane %v61, 1
    %v63 = vadd.f32 %v61, %v62
    %v64 = vmul.f32 %v36, %v57
    %v65 = vsel %vm45, %v64, 0.0
    %v66 = vrot.slane %v65, 4
    %v67 = vadd.f32 %v65, %v66
    %v68 = vrot.slane %v67, 2
    %v69 = vadd.f32 %v67, %v68
    %v70 = vrot.slane %v69, 1
    %v71 = vadd.f32 %v69, %v70
    %v72 = vrcp.pop %v63
    %v73 = vmul.f32 %v71, %v72
    %vm74 = vcmask 253952
    %75 = vst.msk [vmem:[#allocation7] sm:$0x1] %vm74, %v73
    // Predicated region
    $region18: #{tpu_custom_call.1} parent=1 // pred_check
      _
    $region19: #{tpu_custom_call.1} parent=1 // pred_check_branch
      %77 = sbr.rel (0) target = $region21
    $region20: #{tpu_custom_call.1} parent=1 // pred_region
      %s79 = ssub.s32 16, 16
      %80 = vsyncadd [#allocation4], %s79
      %s82 = sshll.u32 [#allocation7], 4
      %s83 = int_to_ptr.vmem [resolvable:$true] %s82
      %85 = dma.vmem_to_hbm [thread:$0]  %s83, 16, %s2, [#allocation4]
    $region21: #{tpu_custom_call.1} parent=1 // pred_fallthru
      _
    // Predicated region
    $region22: #{tpu_custom_call.1} parent=1 // pred_check
      _
    $region23: #{tpu_custom_call.1} parent=1 // pred_check_branch
      %87 = sbr.rel (0) target = $region25
    $region24: #{tpu_custom_call.1} parent=1 // pred_region
      %88 = dma.done [#allocation4], 16
    $region25: #{tpu_custom_call.1} parent=1 // pred_fallthru
      _
    %89 = vsyncpa [#allocation3], 1
    %90 = vsyncpa [#allocation6], 1
    %91 = vsyncpa [#allocation4], 1

</llo_original>
